<compile_context>
chip_gen: v6e
topology: v6e:2x2x1
jax: 0.10.0
libtpu: 0.0.40
codegen_flags: <defaults>
</compile_context>

<pallas_src>
import functools

import jax
import jax.numpy as jnp
from jax.experimental import pallas as pl
from jax.experimental.pallas import tpu as pltpu

_EPSILON = 1e-5
_LANES = 128


def _dcloss_kernel(out_ref, tgt_ref, sq_ref, en_ref, sq_acc, en_acc, *,
                   tiles_per_split, tm, m_valid, needs_mask):
    p = pl.program_id(0)   # parallel split (TensorCore) index
    j = pl.program_id(1)   # streaming reduction step within the split

    @pl.when(j == 0)
    def _():
        sq_acc[...] = jnp.zeros_like(sq_acc)
        en_acc[...] = jnp.zeros_like(en_acc)

    out = out_ref[...].astype(jnp.float32)   # (B, TM, 128)
    tgt = tgt_ref[...].astype(jnp.float32)   # (B, TM, 128)

    if needs_mask:
        # Zero out feature rows past the valid range (only the globally last
        # tile can be partial).  Both tensors are zeroed so diff and energy
        # contributions stay exactly zero.
        t = p * tiles_per_split + j
        row = jax.lax.broadcasted_iota(jnp.int32, (tm, _LANES), 0) + t * tm
        valid = (row < m_valid)[None, :, :]
        out = jnp.where(valid, out, 0.0)
        tgt = jnp.where(valid, tgt, 0.0)

    # Numerator contribution: one batch-sum of (tgt - out); the 1/B^2 factor
    # is folded into the JAX epilogue.
    d = jnp.sum(tgt - out, axis=0)                  # (TM, 128)
    sq_acc[...] += d * d
    # Target energy contribution.
    en_acc[...] += jnp.sum(tgt * tgt, axis=0)       # (TM, 128)

    @pl.when(j == pl.num_programs(1) - 1)
    def _():
        sq_ref[...] = jnp.full(sq_ref.shape, jnp.sum(sq_acc[...]), jnp.float32)
        en_ref[...] = jnp.full(en_ref.shape, jnp.sum(en_acc[...]), jnp.float32)


def dc_loss(output, target, *, vmem_block_budget_bytes=24 * 1024 * 1024):
    assert output.shape == target.shape
    b = output.shape[0]
    n = 1
    for d in output.shape[1:]:
        n *= d

    out2d = output.reshape(b, n)
    tgt2d = target.reshape(b, n)

    if n % _LANES != 0:
        # TODO(synk): mask the ragged lane tail in-kernel instead of padding
        # (jnp.pad round-trips the full tensors through HBM).
        n_pad = pl.cdiv(n, _LANES) * _LANES
        out2d = jnp.pad(out2d, ((0, 0), (0, n_pad - n)))
        tgt2d = jnp.pad(tgt2d, ((0, 0), (0, n_pad - n)))
    m = out2d.shape[1] // _LANES

    # Lane-dense 3D view: (B, M, 128).  Reshape of a contiguous array is free.
    out3d = out2d.reshape(b, m, _LANES)
    tgt3d = tgt2d.reshape(b, m, _LANES)

    # Tile over M: largest multiple of 8 fitting the VMEM budget.
    #   2 inputs x 2 buffers x B x TM x 128 x 4B  +  2 x TM x 128 x 4B (acc)
    bytes_per_tm_row = 2 * 2 * b * _LANES * 4 + 2 * _LANES * 4
    tm = max(8, (vmem_block_budget_bytes // bytes_per_tm_row) // 8 * 8)
    if tm >= m:
        tm = m                       # full-extent block (always legal)
    num_tiles = pl.cdiv(m, tm)

    # Split the feature stream across 2 TensorCores when it divides evenly
    # (v7x megacore); a plain serial loop on single-TC chips.
    num_splits = 2 if (num_tiles >= 2 and num_tiles % 2 == 0) else 1
    tiles_per_split = num_tiles // num_splits
    needs_mask = (num_tiles * tm != m)

    kernel = functools.partial(
        _dcloss_kernel,
        tiles_per_split=tiles_per_split, tm=tm, m_valid=m,
        needs_mask=needs_mask)

    in_spec = pl.BlockSpec((b, tm, _LANES),
                           lambda p, j: (0, p * tiles_per_split + j, 0))
    out_spec = pl.BlockSpec((1, 8, _LANES), lambda p, j: (p, 0, 0))

    itemsize = int(out2d.dtype.itemsize)
    cost = pl.CostEstimate(flops=int(4 * b * n), transcendentals=0,
                           bytes_accessed=int(2 * b * n * itemsize))

    sq_part, en_part = pl.pallas_call(
        kernel,
        out_shape=(jax.ShapeDtypeStruct((num_splits, 8, _LANES), jnp.float32),
                   jax.ShapeDtypeStruct((num_splits, 8, _LANES), jnp.float32)),
        grid_spec=pltpu.PrefetchScalarGridSpec(
            num_scalar_prefetch=0,
            grid=(num_splits, tiles_per_split),
            in_specs=[in_spec, in_spec],
            out_specs=[out_spec, out_spec],
            scratch_shapes=[pltpu.VMEM((tm, _LANES), jnp.float32),
                            pltpu.VMEM((tm, _LANES), jnp.float32)],
        ),
        compiler_params=pltpu.CompilerParams(
            dimension_semantics=("parallel", "arbitrary"),
            vmem_limit_bytes=40 * 1024 * 1024),
        cost_estimate=cost,
    )(out3d, tgt3d)

    # Tiny scalar epilogue (fold 1/B^2 and the feature/element means here).
    sq_sum = jnp.sum(sq_part[:, 0, 0])
    en_sum = jnp.sum(en_part[:, 0, 0])
    num = sq_sum / jnp.float32(b * b * n)
    energy = en_sum / jnp.float32(b * n) + jnp.float32(_EPSILON)
    return num / energy


def dc_loss_ref(output, target):
    # pure-JAX reference matching the PyTorch module exactly
    diff = jnp.mean(target, axis=0) - jnp.mean(output, axis=0)
    loss = jnp.mean(diff ** 2)
    energy = jnp.mean(target ** 2) + _EPSILON
    return loss / energy


if __name__ == "__main__":
    key = jax.random.PRNGKey(0)
    k1, k2, k3, k4 = jax.random.split(key, 4)

    # NCHW-shaped synthetic inputs (batch=2, channels=4, spatial=16x16)
    output = jax.random.normal(k1, (2, 4, 16, 16), dtype=jnp.float32)
    target = jax.random.normal(k2, (2, 4, 16, 16), dtype=jnp.float32)
    loss = jax.block_until_ready(dc_loss(output, target))
    ref = dc_loss_ref(output, target)
    assert jnp.allclose(loss, ref, rtol=1e-5, atol=1e-6), (loss, ref)

    # second small case (different batch / feature count)
    output2 = jax.random.normal(k3, (4, 4, 8, 8), dtype=jnp.float32)
    target2 = jax.random.normal(k4, (4, 4, 8, 8), dtype=jnp.float32)
    loss2 = jax.block_until_ready(dc_loss(output2, target2))
    ref2 = dc_loss_ref(output2, target2)
    assert jnp.allclose(loss2, ref2, rtol=1e-5, atol=1e-6), (loss2, ref2)

    print("KERNEL_OK")
</pallas_src>

<mosaic_0001>
module attributes {stable_mosaic.version = 11 : i64} {
  func.func @_dcloss_kernel(%arg0: i32, %arg1: i32, %arg2: memref<2x8x128xf32, #tpu.memory_space<vmem>>, %arg3: memref<2x8x128xf32, #tpu.memory_space<vmem>>, %arg4: memref<1x8x128xf32, #tpu.memory_space<vmem>>, %arg5: memref<1x8x128xf32, #tpu.memory_space<vmem>>, %arg6: memref<8x128xf32, #tpu.memory_space<vmem>>, %arg7: memref<8x128xf32, #tpu.memory_space<vmem>>) attributes {dimension_semantics = [#tpu.dimension_semantics<parallel>, #tpu.dimension_semantics<arbitrary>], iteration_bounds = array<i64: 1, 1>, scalar_prefetch = 0 : i64, scratch_operands = 2 : i64, tpu.core_type = #tpu.core_type<tc>, window_params = [{transform_indices = @transform_0, window_bounds = array<i64: 2, 8, 128>}, {transform_indices = @transform_1, window_bounds = array<i64: 2, 8, 128>}, {transform_indices = @transform_2, window_bounds = array<i64: 1, 8, 128>}, {transform_indices = @transform_3, window_bounds = array<i64: 1, 8, 128>}]} {
    %c0_i32 = arith.constant 0 : i32
    %0 = arith.cmpi eq, %arg1, %c0_i32 : i32
    %1 = arith.extui %0 : i1 to i32
    %c0_i32_0 = arith.constant 0 : i32
    %2 = arith.cmpi ne, %1, %c0_i32_0 : i32
    scf.if %2 {
      %cst_17 = arith.constant 0.000000e+00 : f32
      %19 = vector.broadcast %cst_17 : f32 to vector<8x128xf32>
      %c0_18 = arith.constant 0 : index
      %c0_19 = arith.constant 0 : index
      %20 = vector.load %arg6[%c0_18, %c0_19] : memref<8x128xf32, #tpu.memory_space<vmem>>, vector<8x128xf32>
      tpu.vector_store %arg6[%c0_18, %c0_19], %19 {strides = array<i32>} : memref<8x128xf32, #tpu.memory_space<vmem>>, vector<8x128xf32>,
      %cst_20 = arith.constant 0.000000e+00 : f32
      %21 = vector.broadcast %cst_20 : f32 to vector<8x128xf32>
      %c0_21 = arith.constant 0 : index
      %c0_22 = arith.constant 0 : index
      %22 = vector.load %arg7[%c0_21, %c0_22] : memref<8x128xf32, #tpu.memory_space<vmem>>, vector<8x128xf32>
      tpu.vector_store %arg7[%c0_21, %c0_22], %21 {strides = array<i32>} : memref<8x128xf32, #tpu.memory_space<vmem>>, vector<8x128xf32>,
    } else {
    }
    %c0 = arith.constant 0 : index
    %c0_1 = arith.constant 0 : index
    %c0_2 = arith.constant 0 : index
    %3 = vector.load %arg2[%c0, %c0_1, %c0_2] : memref<2x8x128xf32, #tpu.memory_space<vmem>>, vector<2x8x128xf32>
    %c0_3 = arith.constant 0 : index
    %c0_4 = arith.constant 0 : index
    %c0_5 = arith.constant 0 : index
    %4 = vector.load %arg3[%c0_3, %c0_4, %c0_5] : memref<2x8x128xf32, #tpu.memory_space<vmem>>, vector<2x8x128xf32>
    %5 = arith.subf %4, %3 : vector<2x8x128xf32>
    %cst = arith.constant dense<0.000000e+00> : vector<8x128xf32>
    %6 = vector.multi_reduction <add>, %5, %cst [0] : vector<2x8x128xf32> to vector<8x128xf32>
    %c0_6 = arith.constant 0 : index
    %c0_7 = arith.constant 0 : index
    %7 = vector.load %arg6[%c0_6, %c0_7] : memref<8x128xf32, #tpu.memory_space<vmem>>, vector<8x128xf32>
    %8 = arith.mulf %6, %6 : vector<8x128xf32>
    %9 = arith.addf %7, %8 : vector<8x128xf32>
    %c0_8 = arith.constant 0 : index
    %c0_9 = arith.constant 0 : index
    %10 = vector.load %arg6[%c0_8, %c0_9] : memref<8x128xf32, #tpu.memory_space<vmem>>, vector<8x128xf32>
    tpu.vector_store %arg6[%c0_8, %c0_9], %9 {strides = array<i32>} : memref<8x128xf32, #tpu.memory_space<vmem>>, vector<8x128xf32>,
    %c0_10 = arith.constant 0 : index
    %c0_11 = arith.constant 0 : index
    %11 = vector.load %arg7[%c0_10, %c0_11] : memref<8x128xf32, #tpu.memory_space<vmem>>, vector<8x128xf32>
    %12 = arith.mulf %4, %4 : vector<2x8x128xf32>
    %cst_12 = arith.constant dense<0.000000e+00> : vector<8x128xf32>
    %13 = vector.multi_reduction <add>, %12, %cst_12 [0] : vector<2x8x128xf32> to vector<8x128xf32>
    %14 = arith.addf %11, %13 : vector<8x128xf32>
    %c0_13 = arith.constant 0 : index
    %c0_14 = arith.constant 0 : index
    %15 = vector.load %arg7[%c0_13, %c0_14] : memref<8x128xf32, #tpu.memory_space<vmem>>, vector<8x128xf32>
    tpu.vector_store %arg7[%c0_13, %c0_14], %14 {strides = array<i32>} : memref<8x128xf32, #tpu.memory_space<vmem>>, vector<8x128xf32>,
    %c0_i32_15 = arith.constant 0 : i32
    %16 = arith.cmpi eq, %arg1, %c0_i32_15 : i32
    %17 = arith.extui %16 : i1 to i32
    %c0_i32_16 = arith.constant 0 : i32
    %18 = arith.cmpi ne, %17, %c0_i32_16 : i32
    scf.if %18 {
      %c0_17 = arith.constant 0 : index
      %c0_18 = arith.constant 0 : index
      %19 = vector.load %arg6[%c0_17, %c0_18] : memref<8x128xf32, #tpu.memory_space<vmem>>, vector<8x128xf32>
      %20 = vector.shape_cast %19 : vector<8x128xf32> to vector<1x8x128xf32>
      %cst_19 = arith.constant dense<0.000000e+00> : vector<1xf32>
      %21 = vector.multi_reduction <add>, %20, %cst_19 [1, 2] : vector<1x8x128xf32> to vector<1xf32>
      %22 = vector.shape_cast %21 : vector<1xf32> to vector<1x1x1xf32>
      %23 = vector.extract %22[0, 0, 0] : f32 from vector<1x1x1xf32>
      %24 = vector.broadcast %23 : f32 to vector<1x8x128xf32>
      %c0_20 = arith.constant 0 : index
      %c0_21 = arith.constant 0 : index
      %c0_22 = arith.constant 0 : index
      %25 = vector.load %arg4[%c0_20, %c0_21, %c0_22] : memref<1x8x128xf32, #tpu.memory_space<vmem>>, vector<1x8x128xf32>
      tpu.vector_store %arg4[%c0_20, %c0_21, %c0_22], %24 {strides = array<i32>} : memref<1x8x128xf32, #tpu.memory_space<vmem>>, vector<1x8x128xf32>,
      %c0_23 = arith.constant 0 : index
      %c0_24 = arith.constant 0 : index
      %26 = vector.load %arg7[%c0_23, %c0_24] : memref<8x128xf32, #tpu.memory_space<vmem>>, vector<8x128xf32>
      %27 = vector.shape_cast %26 : vector<8x128xf32> to vector<1x8x128xf32>
      %cst_25 = arith.constant dense<0.000000e+00> : vector<1xf32>
      %28 = vector.multi_reduction <add>, %27, %cst_25 [1, 2] : vector<1x8x128xf32> to vector<1xf32>
      %29 = vector.shape_cast %28 : vector<1xf32> to vector<1x1x1xf32>
      %30 = vector.extract %29[0, 0, 0] : f32 from vector<1x1x1xf32>
      %31 = vector.broadcast %30 : f32 to vector<1x8x128xf32>
      %c0_26 = arith.constant 0 : index
      %c0_27 = arith.constant 0 : index
      %c0_28 = arith.constant 0 : index
      %32 = vector.load %arg5[%c0_26, %c0_27, %c0_28] : memref<1x8x128xf32, #tpu.memory_space<vmem>>, vector<1x8x128xf32>
      tpu.vector_store %arg5[%c0_26, %c0_27, %c0_28], %31 {strides = array<i32>} : memref<1x8x128xf32, #tpu.memory_space<vmem>>, vector<1x8x128xf32>,
    } else {
    }
    return
  }
  func.func @transform_0(%arg0: i32, %arg1: i32) -> (i32, i32, i32) {
    %c1_i32 = arith.constant 1 : i32
    %0 = arith.muli %arg0, %c1_i32 : i32
    %1 = arith.addi %0, %arg1 : i32
    %c0_i32 = arith.constant 0 : i32
    %c0_i32_0 = arith.constant 0 : i32
    %c0_i32_1 = arith.constant 0 : i32
    return %c0_i32, %1, %c0_i32_0 : i32, i32, i32
  }
  func.func @transform_1(%arg0: i32, %arg1: i32) -> (i32, i32, i32) {
    %c1_i32 = arith.constant 1 : i32
    %0 = arith.muli %arg0, %c1_i32 : i32
    %1 = arith.addi %0, %arg1 : i32
    %c0_i32 = arith.constant 0 : i32
    %c0_i32_0 = arith.constant 0 : i32
    %c0_i32_1 = arith.constant 0 : i32
    return %c0_i32, %1, %c0_i32_0 : i32, i32, i32
  }
  func.func @transform_2(%arg0: i32, %arg1: i32) -> (i32, i32, i32) {
    %c0_i32 = arith.constant 0 : i32
    %c0_i32_0 = arith.constant 0 : i32
    %c0_i32_1 = arith.constant 0 : i32
    return %arg0, %c0_i32, %c0_i32_0 : i32, i32, i32
  }
  func.func @transform_3(%arg0: i32, %arg1: i32) -> (i32, i32, i32) {
    %c0_i32 = arith.constant 0 : i32
    %c0_i32_0 = arith.constant 0 : i32
    %c0_i32_1 = arith.constant 0 : i32
    return %arg0, %c0_i32, %c0_i32_0 : i32, i32, i32
  }
}

</mosaic_0001>

<llo_original>
// kernel: tpu_custom_call.1
$region0: #{tpu_custom_call.1}
  #allocation0 [shape = 'u32[]', space=smem, size = 0x4, offset = 0x4, fixed_abs, tag = 'smem constant byte address 0x4 - core index']
  #allocation1 [shape = 'u32[144,128]{1,0:T(1,128)}', space=vmem, size = 0x12000, scoped, tag = 'internal scratch']
  #allocation2 [shape = 'f32[8,128]{1,0:T(8,128)}', space=vmem, size = 0x1000, scoped, tag = 'scratch operand']
  #allocation3 [shape = 'f32[8,128]{1,0:T(8,128)}', space=vmem, size = 0x1000, scoped, tag = 'scratch operand']
  %s0 = inlined_call_operand.hbm [shape: f32[2,8,128], index: 0, kind: input, shape index: {}]
  %s1 = inlined_call_operand.hbm [shape: f32[2,8,128], index: 1, kind: input, shape index: {}]
  %s2 = inlined_call_operand.hbm [shape: f32[1,8,128], index: 2, kind: output, shape index: {0}]
  %s3 = inlined_call_operand.hbm [shape: f32[1,8,128], index: 3, kind: output, shape index: {1}]
  %4 = xla_tuple %s2, %s3
  %s5 = sld [smem:[#allocation0]]
  $region42: #{tpu_custom_call.1} parent=0
    _
  %s7 = ssub.s32 1, %s5
  %s8 = scalar_select 0, %s7, %s5
  $region1: #{tpu_custom_call.1} parent=0
    #allocation4 [shape = 'u8[8192]{0}', space=vmem, size = 0x2000, scoped, tag = 'input window, operand 0, single buffered']
    #allocation5 [shape = 's32[1]{0}', space=sflag, size = 0x4, scoped, tag = 'scoped memory for tpu_custom_call.1']
    #allocation6 [shape = 's32[1]{0}', space=sflag, size = 0x4, scoped, tag = 'scoped memory for tpu_custom_call.1']
    #allocation7 [shape = 'u8[8192]{0}', space=vmem, size = 0x2000, scoped, tag = 'input window, operand 1, single buffered']
    #allocation8 [shape = 's32[1]{0}', space=sflag, size = 0x4, scoped, tag = 'scoped memory for tpu_custom_call.1']
    #allocation9 [shape = 'u8[4096]{0}', space=vmem, size = 0x1000, scoped, tag = 'output window, operand 0, single buffered']
    #allocation10 [shape = 'u8[4096]{0}', space=vmem, size = 0x1000, scoped, tag = 'output window, operand 1, single buffered']
    #allocation11 [shape = 's32[1]{0}', space=sflag, size = 0x4, scoped, tag = 'scoped memory for tpu_custom_call.1']
    %9 = vsyncpa [#allocation5], 0
    %10 = vsyncpa [#allocation8], 0
    %11 = vsyncpa [#allocation6], 0
    %12 = vsyncpa [#allocation11], 0
    // Predicated region
    $region2: #{tpu_custom_call.1} parent=1 // pred_check
      _
    $region3: #{tpu_custom_call.1} parent=1 // pred_check_branch
      %14 = sbr.rel (0) target = $region5
    $region4: #{tpu_custom_call.1} parent=1 // pred_region
      %s15 = sadd.s32 0, 0
      %s17 = ssub.s32 256, 256
      %18 = vsyncadd [#allocation5], %s17
      %s19 = smul.addr %s15, 128
      %s20 = scalar_lea.hbm %s0, %s19
      %s21 = sshll.u32 [#allocation4], 4
      %s22 = int_to_ptr.vmem [resolvable:$true] %s21
      %27 = dma.hbm_to_vmem [thread:$0]  %s20, 256, %s22, [#allocation5], 128, 128, 8
    $region5: #{tpu_custom_call.1} parent=1 // pred_fallthru
      _
    // Predicated region
    $region6: #{tpu_custom_call.1} parent=1 // pred_check
      _
    $region7: #{tpu_custom_call.1} parent=1 // pred_check_branch
      %29 = sbr.rel (0) target = $region9
    $region8: #{tpu_custom_call.1} parent=1 // pred_region
      %s30 = sadd.s32 0, 0
      %s32 = ssub.s32 256, 256
      %33 = vsyncadd [#allocation8], %s32
      %s34 = smul.addr %s30, 128
      %s35 = scalar_lea.hbm %s1, %s34
      %s36 = sshll.u32 [#allocation7], 4
      %s37 = int_to_ptr.vmem [resolvable:$true] %s36
      %42 = dma.hbm_to_vmem [thread:$0]  %s35, 256, %s37, [#allocation8], 128, 128, 8
    $region9: #{tpu_custom_call.1} parent=1 // pred_fallthru
      _
    // Predicated region
    $region10: #{tpu_custom_call.1} parent=1 // pred_check
      _
    $region11: #{tpu_custom_call.1} parent=1 // pred_check_branch
      %44 = sbr.rel (0) target = $region13
    $region12: #{tpu_custom_call.1} parent=1 // pred_region
      %45 = dma.done [#allocation5], 256
    $region13: #{tpu_custom_call.1} parent=1 // pred_fallthru
      _
    // Predicated region
    $region14: #{tpu_custom_call.1} parent=1 // pred_check
      _
    $region15: #{tpu_custom_call.1} parent=1 // pred_check_branch
      %47 = sbr.rel (0) target = $region17
    $region16: #{tpu_custom_call.1} parent=1 // pred_region
      %48 = dma.done [#allocation8], 256
    $region17: #{tpu_custom_call.1} parent=1 // pred_fallthru
      _
    %s49 = sadd.s32 0, 0
    %s50 = sadd.s32 0, 0
    %p51 = scmp.eq.s32.totalorder 0, 0
    // Predicated region
    $region18: #{tpu_custom_call.1} parent=1 // pred_check
      %p52 = pneg %p51
    $region19: #{tpu_custom_call.1} parent=1 // pred_check_branch
      %54 = sbr.rel (%p52) target = $region21
    $region20: #{tpu_custom_call.1} parent=1 // pred_region
      %55 = vst [vmem:[#allocation2] sm:$0xff] 0.0
      %56 = vst [vmem:[#allocation3] sm:$0xff] 0.0
    $region21: #{tpu_custom_call.1} parent=1 // pred_fallthru
      _
    %v57 = vld [vmem:[#allocation4] sm:$0xff]
    %v58 = vld [vmem:[#allocation4 + $0x8] sm:$0xff]
    %v59 = vld [vmem:[#allocation7] sm:$0xff]
    %v60 = vld [vmem:[#allocation7 + $0x8] sm:$0xff]
    %v61 = vsub.f32 %v59, %v57
    %v62 = vsub.f32 %v60, %v58
    %v63 = vadd.f32 %v61, %v62
    %v64 = vld [vmem:[#allocation2] sm:$0xff]
    %v65 = vmul.f32 %v63, %v63
    %v66 = vadd.f32 %v64, %v65
    %67 = vst [vmem:[#allocation2] sm:$0xff] %v66
    %v68 = vld [vmem:[#allocation3] sm:$0xff]
    %v69 = vmul.f32 %v59, %v59
    %v70 = vmul.f32 %v60, %v60
    %v71 = vadd.f32 %v69, %v70
    %v72 = vadd.f32 %v68, %v71
    %73 = vst [vmem:[#allocation3] sm:$0xff] %v72
    // Predicated region
    $region22: #{tpu_custom_call.1} parent=1 // pred_check
      %p74 = pneg %p51
    $region23: #{tpu_custom_call.1} parent=1 // pred_check_branch
      %76 = sbr.rel (%p74) target = $region25
    $region24: #{tpu_custom_call.1} parent=1 // pred_region
      %v77 = vld [vmem:[#allocation2] sm:$0xff]
      %78 = vadd.xlane.f32.xlu0 %v77
      %v79 = vpop.xlane.xlu0 %78
      %v80 = vrot.slane %v79, 4
      %v81 = vadd.f32 %v79, %v80
      %v82 = vrot.slane %v81, 2
      %v83 = vadd.f32 %v81, %v82
      %v84 = vrot.slane %v83, 1
      %v85 = vadd.f32 %v83, %v84
      %s86 = vtos %v85
      %v87 = vstv %s86
      %88 = vst [vmem:[#allocation9] sm:$0xff] %v87
      %v89 = vld [vmem:[#allocation3] sm:$0xff]
      %90 = vadd.xlane.f32.xlu0 %v89
      %v91 = vpop.xlane.xlu0 %90
      %v92 = vrot.slane %v91, 4
      %v93 = vadd.f32 %v91, %v92
      %v94 = vrot.slane %v93, 2
      %v95 = vadd.f32 %v93, %v94
      %v96 = vrot.slane %v95, 1
      %v97 = vadd.f32 %v95, %v96
      %s98 = vtos %v97
      %v99 = vstv %s98
      %100 = vst [vmem:[#allocation10] sm:$0xff] %v99
    $region25: #{tpu_custom_call.1} parent=1 // pred_fallthru
      _
    // Predicated region
    $region26: #{tpu_custom_call.1} parent=1 // pred_check
      _
    $region27: #{tpu_custom_call.1} parent=1 // pred_check_branch
      %102 = sbr.rel (0) target = $region29
    $region28: #{tpu_custom_call.1} parent=1 // pred_region
      %s104 = ssub.s32 128, 128
      %105 = vsyncadd [#allocation6], %s104
      %s107 = sshll.u32 [#allocation9], 4
      %s108 = int_to_ptr.vmem [resolvable:$true] %s107
      %110 = dma.vmem_to_hbm [thread:$0]  %s108, 128, %s2, [#allocation6]
    $region29: #{tpu_custom_call.1} parent=1 // pred_fallthru
      _
    // Predicated region
    $region30: #{tpu_custom_call.1} parent=1 // pred_check
      _
    $region31: #{tpu_custom_call.1} parent=1 // pred_check_branch
      %112 = sbr.rel (0) target = $region33
    $region32: #{tpu_custom_call.1} parent=1 // pred_region
      %s114 = ssub.s32 128, 128
      %115 = vsyncadd [#allocation11], %s114
      %s117 = sshll.u32 [#allocation10], 4
      %s118 = int_to_ptr.vmem [resolvable:$true] %s117
      %120 = dma.vmem_to_hbm [thread:$0]  %s118, 128, %s3, [#allocation11]
    $region33: #{tpu_custom_call.1} parent=1 // pred_fallthru
      _
    // Predicated region
    $region34: #{tpu_custom_call.1} parent=1 // pred_check
      _
    $region35: #{tpu_custom_call.1} parent=1 // pred_check_branch
      %122 = sbr.rel (0) target = $region37
    $region36: #{tpu_custom_call.1} parent=1 // pred_region
      %123 = dma.done [#allocation6], 128
    $region37: #{tpu_custom_call.1} parent=1 // pred_fallthru
      _
    // Predicated region
    $region38: #{tpu_custom_call.1} parent=1 // pred_check
      _
    $region39: #{tpu_custom_call.1} parent=1 // pred_check_branch
      %125 = sbr.rel (0) target = $region41
    $region40: #{tpu_custom_call.1} parent=1 // pred_region
      %126 = dma.done [#allocation11], 128
    $region41: #{tpu_custom_call.1} parent=1 // pred_fallthru
      _
    %127 = vsyncpa [#allocation5], 1
    %128 = vsyncpa [#allocation8], 1
    %129 = vsyncpa [#allocation6], 1
    %130 = vsyncpa [#allocation11], 1

</llo_original>
